<compile_context>
chip_gen: v5e
topology: v5e:2x2
jax: 0.10.0
libtpu: 0.0.40
codegen_flags: <defaults>
</compile_context>

<pallas_src>
import math
from functools import partial

import jax
import jax.numpy as jnp
from jax import lax
from jax.experimental import pallas as pl
from jax.experimental.pallas import tpu as pltpu


def _round_up(x, m):
    return (x + m - 1) // m * m


def _attn_kernel(q_ref, k_ref, wp_ref, bias_ref, o_ref,
                 *, clip_value, logit_clipping):
    # q_ref:    (NB, TL, D)      bf16 raw queries
    # k_ref:    (NB, Sp, D)      bf16 raw keys
    # wp_ref:   (D, D)           bf16, W' = Wq^T @ Wk / sqrt(D)
    # bias_ref: (NB, 1, Sp)      f32 additive mask bias (0 keep / -inf drop)
    # o_ref:    (NB, TL, Sp)     out dtype (bf16 by default)
    NB, TL, D = q_ref.shape

    # Single projection GEMM for the whole tile (bf16 in, f32 accumulate).
    q2 = q_ref[...].reshape(NB * TL, D)
    qp = jnp.dot(q2, wp_ref[...], preferred_element_type=jnp.float32)
    qp = qp.reshape(NB, TL, D).astype(jnp.bfloat16)

    # Batched score matmul against the RAW keys, contracting D on the last dim of
    # both operands (no projected-K intermediate, no explicit transpose).
    attn = lax.dot_general(
        qp, k_ref[...],
        dimension_numbers=(((2,), (2,)), ((0,), (0,))),
        preferred_element_type=jnp.float32)              # (NB, TL, Sp) f32

    if logit_clipping:
        attn = clip_value * jnp.tanh(attn)               # f32 tanh (v5e-safe)

    attn = attn + bias_ref[...]                          # broadcast over TL
    o_ref[...] = attn.astype(o_ref.dtype)


def transformer_attention(q, k, wq, wk, k_mask=None,
                          logit_clipping=True, clip_value=10.0,
                          out_dtype=jnp.bfloat16,
                          batch_block=1, l_block=None):
    """
    q:  (L, N, D) f32     k: (S, N, D) f32
    wq, wk: (D, D) f32    (nn.Linear weight; projection is x @ W^T)
    k_mask: (N, S) bool or None (True = masked out)
    returns: (N, L, S) in out_dtype (bf16 by default; masked entries are -inf)
    """
    L, N, D = q.shape
    S = k.shape[0]
    out_bytes = jnp.dtype(out_dtype).itemsize

    S_pad = _round_up(S, 128)                 # lane-dense output last dim

    # Batch tile: small so the parallel grid has many steps (v7x 2 TCs) and
    # per-step VMEM stays low. No sublane constraint on NB (bias block is 3-D).
    NB = max(1, min(int(batch_block), N))
    N_pad = _round_up(N, NB)

    # L tile: multiple of 8, sized so the output tile stays ~<= 2 MiB.
    if l_block is None:
        tl = max(8, (2 * 1024 * 1024) // max(1, NB * S_pad * out_bytes))
    else:
        tl = max(8, int(l_block))
    TL = min(_round_up(tl, 8), _round_up(L, 8))
    L_pad = _round_up(L, TL)

    # Batch-major, padded, bf16 MXU operands (cast first so transpose moves bf16).
    q_b = jnp.pad(jnp.transpose(q.astype(jnp.bfloat16), (1, 0, 2)),
                  ((0, N_pad - N), (0, L_pad - L), (0, 0)))
    k_b = jnp.pad(jnp.transpose(k.astype(jnp.bfloat16), (1, 0, 2)),
                  ((0, N_pad - N), (0, S_pad - S), (0, 0)))

    # Fold both projections + 1/sqrt(D) into one DxD matrix (f32, one-time cost).
    wp = ((wq.T @ wk) * (1.0 / math.sqrt(D))).astype(jnp.bfloat16)

    # Additive mask bias (applied after tanh clipping, matching masked_fill(-inf)).
    if k_mask is None:
        bias = jnp.zeros((N_pad, 1, S_pad), dtype=jnp.float32)
    else:
        bias = jnp.where(k_mask, -jnp.inf, 0.0).astype(jnp.float32)      # (N, S)
        bias = jnp.pad(bias, ((0, N_pad - N), (0, S_pad - S)))[:, None, :]

    # Explicit VMEM budget: double-buffered tiles + weights + slack.
    tile_bytes = (NB * TL * D * 2            # q tile (bf16)
                  + NB * S_pad * D * 2       # k tile (bf16)
                  + NB * S_pad * 4           # bias tile (f32)
                  + NB * TL * S_pad * out_bytes)
    vmem_limit = int(min(64 << 20, max(2 * tile_bytes + 2 * D * D * 2 + (1 << 20),
                                       16 << 20)))

    kernel = partial(_attn_kernel,
                     clip_value=float(clip_value),
                     logit_clipping=bool(logit_clipping))

    out = pl.pallas_call(
        kernel,
        out_shape=jax.ShapeDtypeStruct((N_pad, L_pad, S_pad), out_dtype),
        grid_spec=pltpu.PrefetchScalarGridSpec(
            num_scalar_prefetch=0,
            grid=(N_pad // NB, L_pad // TL),          # batch outer, L inner
            in_specs=[
                pl.BlockSpec((NB, TL, D), lambda b, l: (b, l, 0)),     # q tile
                pl.BlockSpec((NB, S_pad, D), lambda b, l: (b, 0, 0)),  # raw k (per batch)
                pl.BlockSpec((D, D), lambda b, l: (0, 0)),             # W' (shared)
                pl.BlockSpec((NB, 1, S_pad), lambda b, l: (b, 0, 0)),  # mask bias
            ],
            out_specs=pl.BlockSpec((NB, TL, S_pad), lambda b, l: (b, l, 0)),
        ),
        compiler_params=pltpu.CompilerParams(
            dimension_semantics=("parallel", "parallel"),
            vmem_limit_bytes=vmem_limit,
        ),
    )(q_b, k_b, wp, bias)

    if (N_pad, L_pad, S_pad) != (N, L, S):
        out = out[:N, :L, :S]
    return out


def _reference(q, k, wq, wk, k_mask, logit_clipping=True, clip_value=10.0):
    D = q.shape[-1]
    qp = jnp.einsum("lnd,ed->lne", q, wq) / math.sqrt(D)
    kp = jnp.einsum("snd,ed->sne", k, wk)
    attn = jnp.einsum("lnd,snd->nls", qp, kp)
    if logit_clipping:
        attn = clip_value * jnp.tanh(attn)
    if k_mask is not None:
        attn = jnp.where(k_mask[:, None, :], -jnp.inf, attn)
    return attn


if __name__ == "__main__":
    # Small shapes consistent with the module: L=8, S=8, N=2, D=32.
    L, S, N, D = 8, 8, 2, 32
    key = jax.random.PRNGKey(0)
    kq, kk, kwq, kwk, kmask = jax.random.split(key, 5)

    q = jax.random.normal(kq, (L, N, D), dtype=jnp.float32)
    k = jax.random.normal(kk, (S, N, D), dtype=jnp.float32)

    # nn.Linear(D, D, bias=False) weight shape (D, D).
    wq = jax.random.normal(kwq, (D, D), dtype=jnp.float32) * (1.0 / math.sqrt(D))
    wk = jax.random.normal(kwk, (D, D), dtype=jnp.float32) * (1.0 / math.sqrt(D))

    # k_mask: (N, S) bool, True means masked out.
    k_mask = jax.random.bernoulli(kmask, p=0.25, shape=(N, S))

    out = transformer_attention(q, k, wq, wk, k_mask,
                                logit_clipping=True, clip_value=10.0)
    out = jax.block_until_ready(out)
    assert out.shape == (N, L, S)
    out_f32 = out.astype(jnp.float32)

    ref = _reference(q, k, wq, wk, k_mask, logit_clipping=True, clip_value=10.0)

    # Masked positions must be exactly -inf in both; finite positions compared
    # with loosened tolerance (bf16 MXU operands, folded W' = Wq^T Wk, bf16 output).
    finite = jnp.isfinite(ref)
    assert bool(jnp.all(jnp.isfinite(out_f32) == finite))
    assert bool(jnp.allclose(jnp.where(finite, out_f32, 0.0),
                             jnp.where(finite, ref, 0.0),
                             atol=2.5e-1, rtol=5e-2))

    print("KERNEL_OK")
</pallas_src>

<mosaic_0001>
module attributes {stable_mosaic.version = 11 : i64} {
  func.func @_attn_kernel(%arg0: i32, %arg1: i32, %arg2: memref<1x8x32xbf16, #tpu.memory_space<vmem>>, %arg3: memref<1x128x32xbf16, #tpu.memory_space<vmem>>, %arg4: memref<32x32xbf16, #tpu.memory_space<vmem>>, %arg5: memref<1x1x128xf32, #tpu.memory_space<vmem>>, %arg6: memref<1x8x128xbf16, #tpu.memory_space<vmem>>) attributes {dimension_semantics = [#tpu.dimension_semantics<parallel>, #tpu.dimension_semantics<parallel>], iteration_bounds = array<i64: 2, 1>, scalar_prefetch = 0 : i64, scratch_operands = 0 : i64, tpu.core_type = #tpu.core_type<tc>, window_params = [{transform_indices = @transform_0, window_bounds = array<i64: 1, 8, 32>}, {transform_indices = @transform_1, window_bounds = array<i64: 1, 128, 32>}, {pipeline_mode = #tpu.pipeline_mode<synchronous>, transform_indices = @transform_2, window_bounds = array<i64: 32, 32>}, {transform_indices = @transform_3, window_bounds = array<i64: 1, 1, 128>}, {transform_indices = @transform_4, window_bounds = array<i64: 1, 8, 128>}]} {
    %c0 = arith.constant 0 : index
    %c0_0 = arith.constant 0 : index
    %c0_1 = arith.constant 0 : index
    %0 = vector.load %arg2[%c0, %c0_0, %c0_1] : memref<1x8x32xbf16, #tpu.memory_space<vmem>>, vector<1x8x32xbf16>
    %1 = vector.shape_cast %0 : vector<1x8x32xbf16> to vector<8x32xbf16>
    %c0_2 = arith.constant 0 : index
    %c0_3 = arith.constant 0 : index
    %2 = vector.load %arg4[%c0_2, %c0_3] : memref<32x32xbf16, #tpu.memory_space<vmem>>, vector<32x32xbf16>
    %cst = arith.constant dense<0.000000e+00> : vector<8x32xf32>
    %3 = tpu.matmul %1, %2, %cst {dimension_numbers = #tpu.dot_dimension_numbers<[1], [0], [0], [1], [0, 0, 1, 1], [], []>} : vector<8x32xbf16>, vector<32x32xbf16>, vector<8x32xf32> -> vector<8x32xf32>
    %4 = vector.shape_cast %3 : vector<8x32xf32> to vector<1x8x32xf32>
    %5 = arith.truncf %4 : vector<1x8x32xf32> to vector<1x8x32xbf16>
    %c0_4 = arith.constant 0 : index
    %c0_5 = arith.constant 0 : index
    %c0_6 = arith.constant 0 : index
    %6 = vector.load %arg3[%c0_4, %c0_5, %c0_6] : memref<1x128x32xbf16, #tpu.memory_space<vmem>>, vector<1x128x32xbf16>
    %cst_7 = arith.constant dense<0.000000e+00> : vector<1x8x128xf32>
    %7 = tpu.matmul %5, %6, %cst_7 {dimension_numbers = #tpu.dot_dimension_numbers<[2], [2], [1], [1], [0, 0, 0, 1, 1, 1], [0], [0]>} : vector<1x8x32xbf16>, vector<1x128x32xbf16>, vector<1x8x128xf32> -> vector<1x8x128xf32>
    %8 = math.tanh %7 : vector<1x8x128xf32>
    %cst_8 = arith.constant 1.000000e+01 : f32
    %9 = vector.broadcast %cst_8 : f32 to vector<1x8x128xf32>
    %10 = arith.mulf %9, %8 : vector<1x8x128xf32>
    %c0_9 = arith.constant 0 : index
    %c0_10 = arith.constant 0 : index
    %c0_11 = arith.constant 0 : index
    %11 = vector.load %arg5[%c0_9, %c0_10, %c0_11] : memref<1x1x128xf32, #tpu.memory_space<vmem>>, vector<1x1x128xf32>
    %12 = vector.broadcast %11 : vector<1x1x128xf32> to vector<1x8x128xf32>
    %13 = arith.addf %10, %12 : vector<1x8x128xf32>
    %14 = arith.truncf %13 : vector<1x8x128xf32> to vector<1x8x128xbf16>
    %c0_12 = arith.constant 0 : index
    %c0_13 = arith.constant 0 : index
    %c0_14 = arith.constant 0 : index
    %15 = vector.load %arg6[%c0_12, %c0_13, %c0_14] : memref<1x8x128xbf16, #tpu.memory_space<vmem>>, vector<1x8x128xbf16>
    tpu.vector_store %arg6[%c0_12, %c0_13, %c0_14], %14 {strides = array<i32>} : memref<1x8x128xbf16, #tpu.memory_space<vmem>>, vector<1x8x128xbf16>,
    return
  }
  func.func @transform_0(%arg0: i32, %arg1: i32) -> (i32, i32, i32) {
    %c0_i32 = arith.constant 0 : i32
    %c0_i32_0 = arith.constant 0 : i32
    return %arg0, %arg1, %c0_i32 : i32, i32, i32
  }
  func.func @transform_1(%arg0: i32, %arg1: i32) -> (i32, i32, i32) {
    %c0_i32 = arith.constant 0 : i32
    %c0_i32_0 = arith.constant 0 : i32
    %c0_i32_1 = arith.constant 0 : i32
    return %arg0, %c0_i32, %c0_i32_0 : i32, i32, i32
  }
  func.func @transform_2(%arg0: i32, %arg1: i32) -> (i32, i32) {
    %c0_i32 = arith.constant 0 : i32
    %c0_i32_0 = arith.constant 0 : i32
    %c0_i32_1 = arith.constant 0 : i32
    return %c0_i32, %c0_i32_0 : i32, i32
  }
  func.func @transform_3(%arg0: i32, %arg1: i32) -> (i32, i32, i32) {
    %c0_i32 = arith.constant 0 : i32
    %c0_i32_0 = arith.constant 0 : i32
    %c0_i32_1 = arith.constant 0 : i32
    return %arg0, %c0_i32, %c0_i32_0 : i32, i32, i32
  }
  func.func @transform_4(%arg0: i32, %arg1: i32) -> (i32, i32, i32) {
    %c0_i32 = arith.constant 0 : i32
    %c0_i32_0 = arith.constant 0 : i32
    return %arg0, %arg1, %c0_i32 : i32, i32, i32
  }
}

</mosaic_0001>

<llo_original>
// kernel: tpu_custom_call.1
$region0: #{tpu_custom_call.1}
  #allocation0 [shape = 'u32[]', space=smem, size = 0x4, offset = 0x4, fixed_abs, tag = 'smem constant byte address 0x4 - core index']
  #allocation1 [shape = 'u32[72,128]{1,0:T(1,128)}', space=vmem, size = 0x9000, scoped, tag = 'internal scratch']
  %s0 = inlined_call_operand.vmem [shape: bf16[2,8,32], index: 0, kind: input, shape index: {}]
  %s1 = inlined_call_operand.vmem [shape: bf16[2,128,32], index: 1, kind: input, shape index: {}]
  %s2 = inlined_call_operand.vmem [shape: bf16[32,32], index: 2, kind: input, shape index: {}]
  %s3 = inlined_call_operand.vmem [shape: f32[2,1,128], index: 3, kind: input, shape index: {}]
  %s4 = inlined_call_operand.hbm [shape: bf16[2,8,128], index: 4, kind: output, shape index: {}]
  %s5 = sld [smem:[#allocation0]]
  $region49: #{tpu_custom_call.1} parent=0
    _
  %s7 = ssub.s32 1, %s5
  %s8 = scalar_select 0, %s7, %s5
  $region1: #{tpu_custom_call.1} parent=0
    #allocation2 [shape = 'u8[4096]{0}', space=vmem, size = 0x1000, scoped, tag = 'output window, operand 0']
    #allocation3 [shape = 's32[2]{0}', space=sflag, size = 0x8, scoped, tag = 'scoped memory for tpu_custom_call.1']
    %9 = vsyncpa [#allocation3], 0
    %s10 = scalar_lea.sflag [#allocation3], 1
    %11 = vsyncpa %s10, 0
    loop: start=0, step=1, limit=4
    $region2: #{tpu_custom_call.1} parent=1 // loop_pre_header
      _
    $region3: #{tpu_custom_call.1} parent=1 // loop_header
      %s13 = sphi 0, %s17
      %p14 = scmp.ge.s32.totalorder %s13, 4
      %s20 = sphi 0, %s32
      %s21 = sphi 0, %s28
      %s22 = sphi 0, %s20
      %s23 = sphi 0, %s21
      %s24 = sphi 0, %s22
      %s25 = sphi 0, %s23
      %s37 = sphi 0, %s39
      %s40 = sphi 0, %s37
      %s41 = sphi 0, %s40
      %s57 = sphi 0, %s41
      %s63 = sphi 0, %s65
      %s66 = sphi 0, %s63
      %s67 = sphi 0, %s66
      %s83 = sphi 0, %s67
      %s87 = sphi 0, %s87
      %s89 = sphi 0, %s87
      %s90 = sphi 0, %s89
      %s104 = sphi 0, %s90
      %s110 = sphi 0, %s112
      %s113 = sphi 0, %s110
      %s114 = sphi 0, %s113
      %s130 = sphi 0, %s114
      %s138 = sphi 0, %s140
      %s141 = sphi 0, %s138
      %s142 = sphi 0, %s141
      %s158 = sphi 0, %s142
    $region4: #{tpu_custom_call.1} parent=1 // loop_header_branch
      %16 = sbr.rel (%p14) target = $region8
    $region5: #{tpu_custom_call.1} parent=1 // loop_body
      %s18 = ssub.s32 %s13, 1
      %s19 = ssub.s32 %s13, 2
      %s26 = sadd.s32 1, %s21
      %p27 = scmp.ge.s32.totalorder %s26, 1
      %s28 = scalar_select %p27, 0, %s26
      %s29 = sadd.s32 1, %s20
      %s30 = scalar_select %p27, %s29, %s20
      %p31 = scmp.ge.s32.totalorder %s30, 2
      %s32 = scalar_select %p31, 0, %s30
      %s33 = ssub.s32 %s20, %s32
      %s34 = ssub.s32 %s21, %s28
      %s35 = sor.u32 %s33, %s34
      %p36 = scmp.eq.s32.totalorder %s35, 0
      %s38 = sadd.s32 %s37, 1
      %s39 = scalar_select %p36, %s37, %s38
      %p42 = pneg %p36
      %p43 = scmp.eq.s32.totalorder %s13, 1
      %p44 = por %p42, %p43
      %p45 = scmp.ne.s32.totalorder %s37, %s40
      %p46 = scmp.eq.s32.totalorder %s13, 0
      %p47 = por %p45, %p46
      %p48 = scmp.ne.s32.totalorder %s37, %s40
      %p49 = scmp.eq.s32.totalorder %s18, 1
      %p50 = por %p48, %p49
      %p51 = scmp.ne.s32.totalorder %s40, %s41
      %p52 = scmp.eq.s32.totalorder %s18, 0
      %p53 = por %p51, %p52
      %p54 = scmp.ne.s32.totalorder %s40, %s41
      %p55 = scmp.eq.s32.totalorder %s19, 1
      %p56 = por %p54, %p55
      %p58 = scmp.ne.s32.totalorder %s41, %s57
      %p59 = scmp.eq.s32.totalorder %s19, 0
      %p60 = por %p58, %p59
      %s61 = ssub.s32 %s20, %s32
      %p62 = scmp.eq.s32.totalorder %s61, 0
      %s64 = sadd.s32 %s63, 1
      %s65 = scalar_select %p62, %s63, %s64
      %p68 = pneg %p62
      %p69 = scmp.eq.s32.totalorder %s13, 1
      %p70 = por %p68, %p69
      %p71 = scmp.ne.s32.totalorder %s63, %s66
      %p72 = scmp.eq.s32.totalorder %s13, 0
      %p73 = por %p71, %p72
      %p74 = scmp.ne.s32.totalorder %s63, %s66
      %p75 = scmp.eq.s32.totalorder %s18, 1
      %p76 = por %p74, %p75
      %p77 = scmp.ne.s32.totalorder %s66, %s67
      %p78 = scmp.eq.s32.totalorder %s18, 0
      %p79 = por %p77, %p78
      %p80 = scmp.ne.s32.totalorder %s66, %s67
      %p81 = scmp.eq.s32.totalorder %s19, 1
      %p82 = por %p80, %p81
      %p84 = scmp.ne.s32.totalorder %s67, %s83
      %p85 = scmp.eq.s32.totalorder %s19, 0
      %p86 = por %p84, %p85
      %s88 = sadd.s32 %s87, 1
      %p91 = scmp.eq.s32.totalorder %s13, 1
      %p92 = scmp.ne.s32.totalorder %s87, %s89
      %p93 = scmp.eq.s32.totalorder %s13, 0
      %p94 = por %p92, %p93
      %p95 = scmp.ne.s32.totalorder %s87, %s89
      %p96 = scmp.eq.s32.totalorder %s18, 1
      %p97 = por %p95, %p96
      %p98 = scmp.ne.s32.totalorder %s89, %s90
      %p99 = scmp.eq.s32.totalorder %s18, 0
      %p100 = por %p98, %p99
      %p101 = scmp.ne.s32.totalorder %s89, %s90
      %p102 = scmp.eq.s32.totalorder %s19, 1
      %p103 = por %p101, %p102
      %p105 = scmp.ne.s32.totalorder %s90, %s104
      %p106 = scmp.eq.s32.totalorder %s19, 0
      %p107 = por %p105, %p106
      %s108 = ssub.s32 %s20, %s32
      %p109 = scmp.eq.s32.totalorder %s108, 0
      %s111 = sadd.s32 %s110, 1
      %s112 = scalar_select %p109, %s110, %s111
      %p115 = pneg %p109
      %p116 = scmp.eq.s32.totalorder %s13, 1
      %p117 = por %p115, %p116
      %p118 = scmp.ne.s32.totalorder %s110, %s113
      %p119 = scmp.eq.s32.totalorder %s13, 0
      %p120 = por %p118, %p119
      %p121 = scmp.ne.s32.totalorder %s110, %s113
      %p122 = scmp.eq.s32.totalorder %s18, 1
      %p123 = por %p121, %p122
      %p124 = scmp.ne.s32.totalorder %s113, %s114
      %p125 = scmp.eq.s32.totalorder %s18, 0
      %p126 = por %p124, %p125
      %p127 = scmp.ne.s32.totalorder %s113, %s114
      %p128 = scmp.eq.s32.totalorder %s19, 1
      %p129 = por %p127, %p128
      %p131 = scmp.ne.s32.totalorder %s114, %s130
      %p132 = scmp.eq.s32.totalorder %s19, 0
      %p133 = por %p131, %p132
      %s134 = ssub.s32 %s20, %s32
      %s135 = ssub.s32 %s21, %s28
      %s136 = sor.u32 %s134, %s135
      %p137 = scmp.eq.s32.totalorder %s136, 0
      %s139 = sadd.s32 %s138, 1
      %s140 = scalar_select %p137, %s138, %s139
      %p143 = pneg %p137
      %p144 = scmp.eq.s32.totalorder %s13, 1
      %p145 = por %p143, %p144
      %p146 = scmp.ne.s32.totalorder %s138, %s141
      %p147 = scmp.eq.s32.totalorder %s13, 0
      %p148 = por %p146, %p147
      %p149 = scmp.ne.s32.totalorder %s138, %s141
      %p150 = scmp.eq.s32.totalorder %s18, 1
      %p151 = por %p149, %p150
      %p152 = scmp.ne.s32.totalorder %s141, %s142
      %p153 = scmp.eq.s32.totalorder %s18, 0
      %p154 = por %p152, %p153
      %p155 = scmp.ne.s32.totalorder %s141, %s142
      %p156 = scmp.eq.s32.totalorder %s19, 1
      %p157 = por %p155, %p156
      %p159 = scmp.ne.s32.totalorder %s142, %s158
      %p160 = scmp.eq.s32.totalorder %s19, 0
      %p161 = por %p159, %p160
      %p162 = scmp.le.s32.totalorder 1, %s13
      %p163 = scmp.lt.s32.totalorder %s13, 3
      %p164 = pnand %p162, %p163
      %p165 = pneg %p164
      // Predicated region
      $region9: #{tpu_custom_call.1} parent=5 // pred_check
        _
      $region10: #{tpu_custom_call.1} parent=5 // pred_check_branch
        %167 = sbr.rel (%p164) target = $region12
      $region11: #{tpu_custom_call.1} parent=5 // pred_region
        %s168 = ssub.s32 %s13, 1
        // Predicated region
        $region13: #{tpu_custom_call.1} parent=11 // pred_check
          %p169 = pneg %p100
        $region14: #{tpu_custom_call.1} parent=11 // pred_check_branch
          %171 = sbr.rel (%p169) target = $region16
        $region15: #{tpu_custom_call.1} parent=11 // pred_region
          _
        $region16: #{tpu_custom_call.1} parent=11 // pred_fallthru
          _
      $region12: #{tpu_custom_call.1} parent=5 // pred_fallthru
        _
      %p172 = scmp.lt.s32.totalorder %s13, 2
      // Predicated region
      $region17: #{tpu_custom_call.1} parent=5 // pred_check
        %p173 = pneg %p172
      $region18: #{tpu_custom_call.1} parent=5 // pred_check_branch
        %175 = sbr.rel (%p173) target = $region20
      $region19: #{tpu_custom_call.1} parent=5 // pred_region
        // Predicated region
        $region21: #{tpu_custom_call.1} parent=19 // pred_check
          %p176 = pneg %p47
        $region22: #{tpu_custom_call.1} parent=19 // pred_check_branch
          %178 = sbr.rel (%p176) target = $region24
        $region23: #{tpu_custom_call.1} parent=19 // pred_region
          %p179 = scmp.lt.s32.totalorder %s20, 1
          %s180 = scalar_select %p179, %s20, 1
          %p181 = scmp.lt.s32.totalorder %s21, 0
          %s182 = scalar_select %p181, %s21, 0
          %s183 = sadd.s32 %s182, %s180
          %s184 = smul.addr %s183, 4
          %s185 = scalar_lea.vmem %s0, %s184
        $region24: #{tpu_custom_call.1} parent=19 // pred_fallthru
          _
        // Predicated region
        $region25: #{tpu_custom_call.1} parent=19 // pred_check
          %p186 = pneg %p73
        $region26: #{tpu_custom_call.1} parent=19 // pred_check_branch
          %188 = sbr.rel (%p186) target = $region28
        $region27: #{tpu_custom_call.1} parent=19 // pred_region
          %p189 = scmp.lt.s32.totalorder %s20, 1
          %s190 = scalar_select %p189, %s20, 1
          %s191 = smul.addr %s190, 16
          %s192 = smul.addr %s191, 4
          %s193 = scalar_lea.vmem %s1, %s192
        $region28: #{tpu_custom_call.1} parent=19 // pred_fallthru
          _
        // Predicated region
        $region29: #{tpu_custom_call.1} parent=19 // pred_check
          %p194 = pneg %p120
        $region30: #{tpu_custom_call.1} parent=19 // pred_check_branch
          %196 = sbr.rel (%p194) target = $region32
        $region31: #{tpu_custom_call.1} parent=19 // pred_region
          %p197 = scmp.lt.s32.totalorder %s20, 1
          %s198 = scalar_select %p197, %s20, 1
          %s199 = scalar_lea.vmem %s3, %s198
        $region32: #{tpu_custom_call.1} parent=19 // pred_fallthru
          _
      $region20: #{tpu_custom_call.1} parent=5 // pred_fallthru
        _
      %p200 = scmp.le.s32.totalorder 1, %s13
      %p201 = scmp.lt.s32.totalorder %s13, 3
      %p202 = pnand %p200, %p201
      %p203 = pneg %p202
      // Predicated region
      $region33: #{tpu_custom_call.1} parent=5 // pred_check
        _
      $region34: #{tpu_custom_call.1} parent=5 // pred_check_branch
        %205 = sbr.rel (%p202) target = $region36
      $region35: #{tpu_custom_call.1} parent=5 // pred_region
        %s206 = ssub.s32 %s13, 1
        %p207 = scmp.lt.s32.totalorder %s22, 1
        %s208 = scalar_select %p207, %s22, 1
        %p209 = scmp.lt.s32.totalorder %s23, 0
        %s210 = scalar_select %p209, %s23, 0
        %s211 = sadd.s32 %s210, %s208
        %s212 = smul.addr %s211, 4
        %s213 = scalar_lea.vmem %s0, %s212
        %p214 = pneg %p53
        %p215 = pneg %p50
        %p216 = scmp.lt.s32.totalorder %s22, 1
        %s217 = scalar_select %p216, %s22, 1
        %s218 = smul.addr %s217, 16
        %s219 = smul.addr %s218, 4
        %s220 = scalar_lea.vmem %s1, %s219
        %p221 = pneg %p79
        %p222 = pneg %p76
        %p223 = pneg %p100
        %p224 = pneg %p97
        %p225 = scmp.lt.s32.totalorder %s22, 1
        %s226 = scalar_select %p225, %s22, 1
        %s227 = scalar_lea.vmem %s3, %s226
        %p228 = pneg %p126
        %p229 = pneg %p123
        %p230 = pneg %p154
        %p231 = pneg %p151
        %s232 = sand.u32 %s141, 1
        %s233 = scalar_lea.sflag [#allocation3], %s232
        %s234 = sand.u32 %s141, 1
        %s235 = smul.addr %s234, 4
        %s236 = scalar_lea.vmem [#allocation2], %s235
        %p237 = scmp.lt.s32.totalorder %s22, 1
        %s238 = scalar_select %p237, %s22, 1
        %p239 = scmp.lt.s32.totalorder %s23, 0
        %s240 = scalar_select %p239, %s23, 0
        %s241 = sadd.s32 %s240, %s238
        %s242 = smul.addr %s241, 4
        %s243 = scalar_lea.vmem %s0, %s242
        %p244 = scmp.lt.s32.totalorder %s22, 1
        %s245 = scalar_select %p244, %s22, 1
        %s246 = smul.addr %s245, 16
        %s247 = smul.addr %s246, 4
        %s248 = scalar_lea.vmem %s1, %s247
        %p249 = scmp.lt.s32.totalorder %s22, 1
        %s250 = scalar_select %p249, %s22, 1
        %s251 = scalar_lea.vmem %s3, %s250
        %v253 = vld [vmem:[%s243] sm:$0xf]
        %v254 = vld [vmem:[%s2] sm:$0xf]
        %v255 = vld [vmem:[%s2 + $0x4] sm:$0xf]
        %v256 = vld [vmem:[%s2 + $0x8] sm:$0xf]
        %v257 = vld [vmem:[%s2 + $0xc] sm:$0xf]
        %v262 = vunpack.c.l.b16 %v254
        %v263 = vunpack.c.l.b16 %v255
        %v264 = vunpack.c.l.b16 %v256
        %v265 = vunpack.c.l.b16 %v257
        %v266 = vpack.c.b16 %v263, %v262
        %v267 = vpack.c.b16 %v265, %v264
        %vm270 = vcmask 261120
        %v272 = vsel %vm270, %v253, 0
        %274 = vmatpush.bf16.msra.mxu0 0
        %275 = vmatpush.bf16.msra.mxu0 0
        %276 = vmatpush.bf16.msra.mxu0 0
        %277 = vmatpush.bf16.msra.mxu0 0
        %278 = vmatpush.bf16.msra.mxu0 0
        %279 = vmatpush.bf16.msra.mxu0 0
        %280 = vmatpush.bf16.msra.mxu0 %v267
        %281 = vmatpush.bf16.msra.mxu0 %v266
        %282 = vmatmul.bf16.gmra.mxu0 %v272
        %v283 = vpop.f32.mrf.mxu0
        %v284 = vadd.f32 0.0, %v283
        %v285 = vpop.f32.mrf.mxu0
        %286 = vdwg.mxu0
        %v287 = vpack.c.bf16 %v284, %v284
        %v288 = vld [vmem:[%s248] sm:$0xf]
        %v289 = vld [vmem:[%s248 + $0x4] sm:$0xf]
        %v290 = vld [vmem:[%s248 + $0x8] sm:$0xf]
        %v291 = vld [vmem:[%s248 + $0xc] sm:$0xf]
        %v292 = vld [vmem:[%s248 + $0x10] sm:$0xf]
        %v293 = vld [vmem:[%s248 + $0x14] sm:$0xf]
        %v294 = vld [vmem:[%s248 + $0x18] sm:$0xf]
        %v295 = vld [vmem:[%s248 + $0x1c] sm:$0xf]
        %v296 = vld [vmem:[%s248 + $0x20] sm:$0xf]
        %v297 = vld [vmem:[%s248 + $0x24] sm:$0xf]
        %v298 = vld [vmem:[%s248 + $0x28] sm:$0xf]
        %v299 = vld [vmem:[%s248 + $0x2c] sm:$0xf]
        %v300 = vld [vmem:[%s248 + $0x30] sm:$0xf]
        %v301 = vld [vmem:[%s248 + $0x34] sm:$0xf]
        %v302 = vld [vmem:[%s248 + $0x38] sm:$0xf]
        %v303 = vld [vmem:[%s248 + $0x3c] sm:$0xf]
        %v320 = vunpack.c.l.b16 %v288
        %v321 = vunpack.c.l.b16 %v289
        %v322 = vunpack.c.l.b16 %v290
        %v323 = vunpack.c.l.b16 %v291
        %v324 = vunpack.c.l.b16 %v292
        %v325 = vunpack.c.l.b16 %v293
        %v326 = vunpack.c.l.b16 %v294
        %v327 = vunpack.c.l.b16 %v295
        %v328 = vunpack.c.l.b16 %v296
        %v329 = vunpack.c.l.b16 %v297
        %v330 = vunpack.c.l.b16 %v298
        %v331 = vunpack.c.l.b16 %v299
        %v332 = vunpack.c.l.b16 %v300
        %v333 = vunpack.c.l.b16 %v301
        %v334 = vunpack.c.l.b16 %v302
        %v335 = vunpack.c.l.b16 %v303
        %v336 = vpack.c.b16 %v321, %v320
        %v337 = vpack.c.b16 %v323, %v322
        %v338 = vpack.c.b16 %v325, %v324
        %v339 = vpack.c.b16 %v327, %v326
        %v340 = vpack.c.b16 %v329, %v328
        %v341 = vpack.c.b16 %v331, %v330
        %v342 = vpack.c.b16 %v333, %v332
        %v343 = vpack.c.b16 %v335, %v334
        %v345 = vsel %vm270, %v287, 0
        %v348 = vsel %vm270, %v336, 0
        %v351 = vsel %vm270, %v337, 0
        %v354 = vsel %vm270, %v338, 0
        %v357 = vsel %vm270, %v339, 0
        %v360 = vsel %vm270, %v340, 0
        %v363 = vsel %vm270, %v341, 0
        %v366 = vsel %vm270, %v342, 0
        %v369 = vsel %vm270, %v343, 0
        %371 = vmatpush.bf16.xpose.msra.mxu0 %v369
        %372 = vmatpush.bf16.xpose.msra.mxu0 %v366
        %373 = vmatpush.bf16.xpose.msra.mxu0 %v363
        %374 = vmatpush.bf16.xpose.msra.mxu0 %v360
        %375 = vmatpush.bf16.xpose.msra.mxu0 %v357
        %376 = vmatpush.bf16.xpose.msra.mxu0 %v354
        %377 = vmatpush.bf16.xpose.msra.mxu0 %v351
        %378 = vmatpush.bf16.xpose.msra.mxu0 %v348
        %379 = vmatmul.bf16.gmra.mxu0 %v345
        %v380 = vpop.f32.mrf.mxu0
        %v381 = vadd.f32 0.0, %v380
        %v382 = vpop.f32.mrf.mxu0
        %383 = vdwg.mxu0
        %v384 = vtanh.pop %v381
        %v385 = vmul.f32 %v384, 10.0
        %v386 = vld [vmem:[%s251] sm:$0x1]
        %v388 = vperm.slane %v386, 0
        %v390 = vadd.f32 %v385, %v388
        %v391 = vpack.c.bf16 %v390, %v390
        %392 = vst [vmem:[%s236] sm:$0xf] %v391
        %s393 = sand.u32 %s141, 1
        %s394 = scalar_lea.sflag [#allocation3], %s393
        %s395 = sand.u32 %s141, 1
        %s396 = smul.addr %s395, 4
        %s397 = scalar_lea.vmem [#allocation2], %s396
        // Predicated region
        $region37: #{tpu_custom_call.1} parent=35 // pred_check
          %p398 = pneg %p151
        $region38: #{tpu_custom_call.1} parent=35 // pred_check_branch
          %400 = sbr.rel (%p398) target = $region40
        $region39: #{tpu_custom_call.1} parent=35 // pred_region
          %402 = vsyncadd %s394, 0
          %s403 = sadd.s32 %s23, %s22
          %s404 = smul.addr %s403, 4
          %s405 = scalar_lea.hbm %s4, %s404
          %s407 = sshll.u32 %s397, 4
          %s408 = int_to_ptr.vmem [resolvable:$true] %s407
          %s409 = sshll.u32 %s405, 4
          %s410 = int_to_ptr.hbm [resolvable:$true] %s409
          %412 = dma.vmem_to_hbm [thread:$0]  %s408, 64, %s410, %s394
        $region40: #{tpu_custom_call.1} parent=35 // pred_fallthru
          _
      $region36: #{tpu_custom_call.1} parent=5 // pred_fallthru
        _
      %p413 = scmp.le.s32.totalorder 2, %s13
      // Predicated region
      $region41: #{tpu_custom_call.1} parent=5 // pred_check
        %p414 = pneg %p413
      $region42: #{tpu_custom_call.1} parent=5 // pred_check_branch
        %416 = sbr.rel (%p414) target = $region44
      $region43: #{tpu_custom_call.1} parent=5 // pred_region
        %s417 = ssub.s32 %s13, 2
        // Predicated region
        $region45: #{tpu_custom_call.1} parent=43 // pred_check
          %p418 = pneg %p157
        $region46: #{tpu_custom_call.1} parent=43 // pred_check_branch
          %420 = sbr.rel (%p418) target = $region48
        $region47: #{tpu_custom_call.1} parent=43 // pred_region
          %s421 = sand.u32 %s142, 1
          %s422 = scalar_lea.sflag [#allocation3], %s421
          %s423 = sand.u32 %s142, 1
          %s424 = smul.addr %s423, 4
          %s425 = scalar_lea.vmem [#allocation2], %s424
          %427 = dma.done %s422, 64
        $region48: #{tpu_custom_call.1} parent=43 // pred_fallthru
          _
      $region44: #{tpu_custom_call.1} parent=5 // pred_fallthru
        _
    $region6: #{tpu_custom_call.1} parent=1 // loop_footer
      %s17 = sadd.s32 1, %s13
    $region7: #{tpu_custom_call.1} parent=1 // loop_footer_branch
      %12 = sbr.rel target = $region3
    $region8: #{tpu_custom_call.1} parent=1 // loop_exit
      _
    %428 = vsyncpa [#allocation3], 1
    %s429 = scalar_lea.sflag [#allocation3], 1
    %430 = vsyncpa %s429, 1

</llo_original>
